<compile_context>
chip_gen: v5e
topology: v5e:2x2
jax: 0.10.0
libtpu: 0.0.40
codegen_flags: <defaults>
</compile_context>

<pallas_src>
from functools import partial

import numpy as np
import jax
import jax.numpy as jnp
from jax.experimental import pallas as pl
from jax.experimental.pallas import tpu as pltpu

NUM_CLASSES = 2
LANE = 128
SUBLANE = 8


def _round_up(x, m):
    return (x + m - 1) // m * m


# ---------------------------------------------------------------------------
# Fused kernel: GCN stack + first-node readout + MLP head + log_softmax
# ---------------------------------------------------------------------------
def make_fused_kernel(latent_dim):
    offs = [int(o) for o in np.cumsum([0] + list(latent_dim))]

    def kernel(a_ref, x_ref, w0_ref, w1c_ref, w2c_ref, cb_ref, sel_ref,
               hw1_ref, hb1_ref, hw2_ref, hb2_ref, o_ref):
        a = a_ref[...]          # bf16 [N, N]  (normalized adjacency)
        sel = sel_ref[...]      # bf16 [Bp, N] (one-hot first-node selector)

        def gcn(h_bf16, w_ref, b_row):
            # H' = tanh( A_norm @ (H @ W) + b ), bf16 MXU operands, f32 accum.
            xw = jnp.dot(h_bf16, w_ref[...], preferred_element_type=jnp.float32)
            agg = jnp.dot(a, xw.astype(jnp.bfloat16),
                          preferred_element_type=jnp.float32)
            return jnp.tanh(agg + b_row)

        conv_w_refs = (w0_ref, w1c_ref, w2c_ref)
        hs = []
        h_bf = x_ref[...]
        for l, w_ref in enumerate(conv_w_refs):
            h = gcn(h_bf, w_ref, cb_ref[l:l + 1, :])   # f32 [N, latent_l]
            hs.append(h)
            h_bf = h.astype(jnp.bfloat16)

        # First-node readout per layer (gather BEFORE concat) via one-hot
        # matmul, then apply the matching row-block of W1 — this avoids an
        # in-kernel lane concatenation entirely.
        hidden = hb1_ref[...]                           # f32 [1, hidden]
        for l, h in enumerate(hs):
            r = jnp.dot(sel, h.astype(jnp.bfloat16),
                        preferred_element_type=jnp.float32)      # [Bp, latent_l]
            w1_blk = hw1_ref[offs[l]:offs[l + 1], :]              # bf16 block
            hidden = hidden + jnp.dot(r.astype(jnp.bfloat16), w1_blk,
                                      preferred_element_type=jnp.float32)
        hidden = jnp.maximum(hidden, 0.0)
        # TODO(synk): dropout (with_dropout=True, training mode) not implemented.

        # W2/b2 are lane-padded to 128; padded lanes carry a -1e30 bias so they
        # contribute nothing to log_softmax. Output store is lane-dense.
        logits = jnp.dot(hidden.astype(jnp.bfloat16), hw2_ref[...],
                         preferred_element_type=jnp.float32) + hb2_ref[...]
        m = jnp.max(logits, axis=1, keepdims=True)
        lse = m + jnp.log(jnp.sum(jnp.exp(logits - m), axis=1, keepdims=True))
        o_ref[...] = logits - lse

    return kernel


# ---------------------------------------------------------------------------
# Jitted wrapper: single fused pallas_call
# ---------------------------------------------------------------------------
@partial(jax.jit, static_argnames=("num_graphs",))
def net_forward(params, x, a_norm, sel, *, num_graphs):
    N, f_in = x.shape
    bp = sel.shape[0]
    latent = tuple(int(w.shape[1]) for w in params["conv_w"])
    cat_dim = sum(latent)
    hidden_size = params["w1"].shape[1]
    bf = jnp.bfloat16

    # bf16 MXU operands at the kernel boundary, f32 biases.
    a_bf = a_norm.astype(bf)
    x_bf = x.astype(bf)
    cw = [w.astype(bf) for w in params["conv_w"]]
    cb = jnp.stack(params["conv_b"]).astype(jnp.float32)            # (3, 32)
    sel_bf = sel.astype(bf)
    hw1 = params["w1"].astype(bf)                                    # (96, 32)
    hb1 = params["b1"].reshape(1, hidden_size).astype(jnp.float32)
    # Pad head output lanes to 128 for a lane-dense (unmasked) store.
    hw2 = jnp.zeros((hidden_size, LANE), bf).at[:, :NUM_CLASSES].set(
        params["w2"].astype(bf))
    hb2 = jnp.full((1, LANE), -1e30, jnp.float32).at[0, :NUM_CLASSES].set(
        params["b2"].astype(jnp.float32))

    kernel = make_fused_kernel(latent)
    out = pl.pallas_call(
        kernel,
        out_shape=jax.ShapeDtypeStruct((bp, LANE), jnp.float32),
        grid=(1,),
        in_specs=[
            pl.BlockSpec((N, N), lambda i: (0, 0)),                  # A_norm
            pl.BlockSpec((N, f_in), lambda i: (0, 0)),               # X
            pl.BlockSpec((f_in, latent[0]), lambda i: (0, 0)),       # conv W0
            pl.BlockSpec((latent[0], latent[1]), lambda i: (0, 0)),  # conv W1
            pl.BlockSpec((latent[1], latent[2]), lambda i: (0, 0)),  # conv W2
            pl.BlockSpec((len(latent), latent[0]), lambda i: (0, 0)),  # conv biases
            pl.BlockSpec((bp, N), lambda i: (0, 0)),                 # first-node selector
            pl.BlockSpec((cat_dim, hidden_size), lambda i: (0, 0)),  # head W1
            pl.BlockSpec((1, hidden_size), lambda i: (0, 0)),        # head b1
            pl.BlockSpec((hidden_size, LANE), lambda i: (0, 0)),     # head W2 (lane-padded)
            pl.BlockSpec((1, LANE), lambda i: (0, 0)),               # head b2 (lane-padded)
        ],
        out_specs=pl.BlockSpec((bp, LANE), lambda i: (0, 0)),
        compiler_params=pltpu.CompilerParams(dimension_semantics=("arbitrary",)),
    )(a_bf, x_bf, cw[0], cw[1], cw[2], cb, sel_bf, hw1, hb1, hw2, hb2)

    return out[:num_graphs, :NUM_CLASSES]


# ---------------------------------------------------------------------------
# Host-side glue (precomputed ONCE, outside the jitted forward)
# ---------------------------------------------------------------------------
def build_norm_adj(edge_index, num_nodes):
    # GCNConv semantics: A_hat = A + I, A_norm = D^-1/2 A_hat D^-1/2.
    a = np.zeros((num_nodes, num_nodes), dtype=np.float32)
    src, dst = np.asarray(edge_index)
    a[src, dst] = 1.0
    a_hat = a + np.eye(num_nodes, dtype=np.float32)
    deg = a_hat.sum(axis=1)
    d_inv_sqrt = np.where(deg > 0, deg ** -0.5, 0.0).astype(np.float32)
    return jnp.asarray(d_inv_sqrt[:, None] * a_hat * d_inv_sqrt[None, :])


def build_first_node_selector(batch, b_pad):
    # One-hot rows: sel[g, first_node_index_of_graph_g] = 1 (rest zero-padded).
    batch = np.asarray(batch)
    n = batch.shape[0]
    sel = np.zeros((b_pad, n), dtype=np.float32)
    first_idx = []
    for row, g in enumerate(np.unique(batch)):
        idx = int(np.nonzero(batch == g)[0][0])
        first_idx.append(idx)
        sel[row, idx] = 1.0
    return jnp.asarray(sel), np.asarray(first_idx)


def init_params(key, input_dim, latent_dim, hidden_size):
    params = {}
    keys = jax.random.split(key, 2 * len(latent_dim) + 4)
    dims = [input_dim] + list(latent_dim)
    conv_w, conv_b = [], []
    ki = 0
    for i in range(len(latent_dim)):
        scale = 1.0 / np.sqrt(dims[i])
        conv_w.append(scale * jax.random.normal(keys[ki], (dims[i], dims[i + 1]),
                                                dtype=jnp.float32)); ki += 1
        conv_b.append(0.01 * jax.random.normal(keys[ki], (dims[i + 1],),
                                               dtype=jnp.float32)); ki += 1
    cat_dim = sum(latent_dim)
    params["conv_w"], params["conv_b"] = conv_w, conv_b
    params["w1"] = (1.0 / np.sqrt(cat_dim)) * jax.random.normal(
        keys[ki], (cat_dim, hidden_size), dtype=jnp.float32); ki += 1
    params["b1"] = 0.01 * jax.random.normal(keys[ki], (hidden_size,),
                                            dtype=jnp.float32); ki += 1
    params["w2"] = (1.0 / np.sqrt(hidden_size)) * jax.random.normal(
        keys[ki], (hidden_size, NUM_CLASSES), dtype=jnp.float32); ki += 1
    params["b2"] = 0.01 * jax.random.normal(keys[ki], (NUM_CLASSES,),
                                            dtype=jnp.float32)
    return params


# Pure-JAX f32 reference (same semantics as the PyTorch module's forward).
def net_forward_ref(params, x, a_norm, first_idx):
    cur = x
    cats = []
    for w, b in zip(params["conv_w"], params["conv_b"]):
        cur = jnp.tanh(a_norm @ (cur @ w) + b)
        cats.append(cur)
    cat = jnp.concatenate(cats, axis=1)[first_idx, :]
    h = jnp.maximum(cat @ params["w1"] + params["b1"], 0.0)
    logits = h @ params["w2"] + params["b2"]
    return jax.nn.log_softmax(logits, axis=1)


# ---------------------------------------------------------------------------
if __name__ == "__main__":
    key = jax.random.PRNGKey(0)
    k_x, k_p = jax.random.split(key)

    input_dim = 16
    hidden_size = 32
    latent_dim = [32, 32, 32]

    # Two graphs of 8 nodes each (ring topology, symmetric edges).
    nodes_per_graph = 8
    num_graphs = 2
    N = nodes_per_graph * num_graphs
    src, dst = [], []
    for g in range(num_graphs):
        off = g * nodes_per_graph
        for v in range(nodes_per_graph):
            u, w = off + v, off + (v + 1) % nodes_per_graph
            src += [u, w]
            dst += [w, u]
    edge_index = np.stack([np.array(src), np.array(dst)])
    batch = np.repeat(np.arange(num_graphs), nodes_per_graph)

    x = jax.random.normal(k_x, (N, input_dim), dtype=jnp.float32)
    a_norm = build_norm_adj(edge_index, N)
    params = init_params(k_p, input_dim, latent_dim, hidden_size)

    # Hoisted out of the forward path: first-node-per-graph selector.
    b_pad = _round_up(max(num_graphs, 1), SUBLANE)
    sel, first_idx = build_first_node_selector(batch, b_pad)

    logits = net_forward(params, x, a_norm, sel, num_graphs=num_graphs)
    logits = jax.block_until_ready(logits)

    ref = net_forward_ref(params, x, a_norm, jnp.asarray(first_idx))

    assert logits.shape == (num_graphs, NUM_CLASSES)
    assert bool(jnp.all(jnp.isfinite(logits)))
    # log_softmax rows must sum (in prob space) to ~1
    assert bool(jnp.allclose(jnp.sum(jnp.exp(logits), axis=1), 1.0, atol=1e-5))
    # matches the f32 reference up to bf16-matmul tolerance
    assert bool(jnp.allclose(logits, ref, atol=2e-1, rtol=2e-1))
    print("KERNEL_OK")
</pallas_src>

<mosaic_0001>
module attributes {stable_mosaic.version = 11 : i64} {
  func.func @kernel(%arg0: i32, %arg1: memref<16x16xbf16, #tpu.memory_space<vmem>>, %arg2: memref<16x16xbf16, #tpu.memory_space<vmem>>, %arg3: memref<16x32xbf16, #tpu.memory_space<vmem>>, %arg4: memref<32x32xbf16, #tpu.memory_space<vmem>>, %arg5: memref<32x32xbf16, #tpu.memory_space<vmem>>, %arg6: memref<3x32xf32, #tpu.memory_space<vmem>>, %arg7: memref<8x16xbf16, #tpu.memory_space<vmem>>, %arg8: memref<96x32xbf16, #tpu.memory_space<vmem>>, %arg9: memref<1x32xf32, #tpu.memory_space<vmem>>, %arg10: memref<32x128xbf16, #tpu.memory_space<vmem>>, %arg11: memref<1x128xf32, #tpu.memory_space<vmem>>, %arg12: memref<8x128xf32, #tpu.memory_space<vmem>>) attributes {dimension_semantics = [#tpu.dimension_semantics<arbitrary>], iteration_bounds = array<i64: 1>, scalar_prefetch = 0 : i64, scratch_operands = 0 : i64, tpu.core_type = #tpu.core_type<tc>, window_params = [{pipeline_mode = #tpu.pipeline_mode<synchronous>, transform_indices = @transform_0, window_bounds = array<i64: 16, 16>}, {pipeline_mode = #tpu.pipeline_mode<synchronous>, transform_indices = @transform_1, window_bounds = array<i64: 16, 16>}, {pipeline_mode = #tpu.pipeline_mode<synchronous>, transform_indices = @transform_2, window_bounds = array<i64: 16, 32>}, {pipeline_mode = #tpu.pipeline_mode<synchronous>, transform_indices = @transform_3, window_bounds = array<i64: 32, 32>}, {pipeline_mode = #tpu.pipeline_mode<synchronous>, transform_indices = @transform_4, window_bounds = array<i64: 32, 32>}, {pipeline_mode = #tpu.pipeline_mode<synchronous>, transform_indices = @transform_5, window_bounds = array<i64: 3, 32>}, {pipeline_mode = #tpu.pipeline_mode<synchronous>, transform_indices = @transform_6, window_bounds = array<i64: 8, 16>}, {pipeline_mode = #tpu.pipeline_mode<synchronous>, transform_indices = @transform_7, window_bounds = array<i64: 96, 32>}, {pipeline_mode = #tpu.pipeline_mode<synchronous>, transform_indices = @transform_8, window_bounds = array<i64: 1, 32>}, {pipeline_mode = #tpu.pipeline_mode<synchronous>, transform_indices = @transform_9, window_bounds = array<i64: 32, 128>}, {pipeline_mode = #tpu.pipeline_mode<synchronous>, transform_indices = @transform_10, window_bounds = array<i64: 1, 128>}, {pipeline_mode = #tpu.pipeline_mode<synchronous>, transform_indices = @transform_11, window_bounds = array<i64: 8, 128>}]} {
    %c0 = arith.constant 0 : index
    %c0_0 = arith.constant 0 : index
    %0 = vector.load %arg1[%c0, %c0_0] : memref<16x16xbf16, #tpu.memory_space<vmem>>, vector<16x16xbf16>
    %c0_1 = arith.constant 0 : index
    %c0_2 = arith.constant 0 : index
    %1 = vector.load %arg7[%c0_1, %c0_2] : memref<8x16xbf16, #tpu.memory_space<vmem>>, vector<8x16xbf16>
    %c0_3 = arith.constant 0 : index
    %c0_4 = arith.constant 0 : index
    %2 = vector.load %arg2[%c0_3, %c0_4] : memref<16x16xbf16, #tpu.memory_space<vmem>>, vector<16x16xbf16>
    %c0_5 = arith.constant 0 : index
    %c0_6 = arith.constant 0 : index
    %3 = vector.load %arg6[%c0_5, %c0_6] : memref<3x32xf32, #tpu.memory_space<vmem>>, vector<1x32xf32>
    %c0_7 = arith.constant 0 : index
    %c0_8 = arith.constant 0 : index
    %4 = vector.load %arg3[%c0_7, %c0_8] : memref<16x32xbf16, #tpu.memory_space<vmem>>, vector<16x32xbf16>
    %cst = arith.constant dense<0.000000e+00> : vector<16x32xf32>
    %5 = tpu.matmul %2, %4, %cst {dimension_numbers = #tpu.dot_dimension_numbers<[1], [0], [0], [1], [0, 0, 1, 1], [], []>} : vector<16x16xbf16>, vector<16x32xbf16>, vector<16x32xf32> -> vector<16x32xf32>
    %6 = arith.truncf %5 : vector<16x32xf32> to vector<16x32xbf16>
    %cst_9 = arith.constant dense<0.000000e+00> : vector<16x32xf32>
    %7 = tpu.matmul %0, %6, %cst_9 {dimension_numbers = #tpu.dot_dimension_numbers<[1], [0], [0], [1], [0, 0, 1, 1], [], []>} : vector<16x16xbf16>, vector<16x32xbf16>, vector<16x32xf32> -> vector<16x32xf32>
    %8 = vector.broadcast %3 : vector<1x32xf32> to vector<16x32xf32>
    %9 = arith.addf %7, %8 : vector<16x32xf32>
    %10 = math.tanh %9 : vector<16x32xf32>
    %11 = arith.truncf %10 : vector<16x32xf32> to vector<16x32xbf16>
    %c1 = arith.constant 1 : index
    %c0_10 = arith.constant 0 : index
    %12 = vector.load %arg6[%c1, %c0_10] : memref<3x32xf32, #tpu.memory_space<vmem>>, vector<1x32xf32>
    %c0_11 = arith.constant 0 : index
    %c0_12 = arith.constant 0 : index
    %13 = vector.load %arg4[%c0_11, %c0_12] : memref<32x32xbf16, #tpu.memory_space<vmem>>, vector<32x32xbf16>
    %cst_13 = arith.constant dense<0.000000e+00> : vector<16x32xf32>
    %14 = tpu.matmul %11, %13, %cst_13 {dimension_numbers = #tpu.dot_dimension_numbers<[1], [0], [0], [1], [0, 0, 1, 1], [], []>} : vector<16x32xbf16>, vector<32x32xbf16>, vector<16x32xf32> -> vector<16x32xf32>
    %15 = arith.truncf %14 : vector<16x32xf32> to vector<16x32xbf16>
    %cst_14 = arith.constant dense<0.000000e+00> : vector<16x32xf32>
    %16 = tpu.matmul %0, %15, %cst_14 {dimension_numbers = #tpu.dot_dimension_numbers<[1], [0], [0], [1], [0, 0, 1, 1], [], []>} : vector<16x16xbf16>, vector<16x32xbf16>, vector<16x32xf32> -> vector<16x32xf32>
    %17 = vector.broadcast %12 : vector<1x32xf32> to vector<16x32xf32>
    %18 = arith.addf %16, %17 : vector<16x32xf32>
    %19 = math.tanh %18 : vector<16x32xf32>
    %20 = arith.truncf %19 : vector<16x32xf32> to vector<16x32xbf16>
    %c2 = arith.constant 2 : index
    %c0_15 = arith.constant 0 : index
    %21 = vector.load %arg6[%c2, %c0_15] : memref<3x32xf32, #tpu.memory_space<vmem>>, vector<1x32xf32>
    %c0_16 = arith.constant 0 : index
    %c0_17 = arith.constant 0 : index
    %22 = vector.load %arg5[%c0_16, %c0_17] : memref<32x32xbf16, #tpu.memory_space<vmem>>, vector<32x32xbf16>
    %cst_18 = arith.constant dense<0.000000e+00> : vector<16x32xf32>
    %23 = tpu.matmul %20, %22, %cst_18 {dimension_numbers = #tpu.dot_dimension_numbers<[1], [0], [0], [1], [0, 0, 1, 1], [], []>} : vector<16x32xbf16>, vector<32x32xbf16>, vector<16x32xf32> -> vector<16x32xf32>
    %24 = arith.truncf %23 : vector<16x32xf32> to vector<16x32xbf16>
    %cst_19 = arith.constant dense<0.000000e+00> : vector<16x32xf32>
    %25 = tpu.matmul %0, %24, %cst_19 {dimension_numbers = #tpu.dot_dimension_numbers<[1], [0], [0], [1], [0, 0, 1, 1], [], []>} : vector<16x16xbf16>, vector<16x32xbf16>, vector<16x32xf32> -> vector<16x32xf32>
    %26 = vector.broadcast %21 : vector<1x32xf32> to vector<16x32xf32>
    %27 = arith.addf %25, %26 : vector<16x32xf32>
    %28 = math.tanh %27 : vector<16x32xf32>
    %c0_20 = arith.constant 0 : index
    %c0_21 = arith.constant 0 : index
    %29 = vector.load %arg9[%c0_20, %c0_21] : memref<1x32xf32, #tpu.memory_space<vmem>>, vector<1x32xf32>
    %30 = arith.truncf %10 : vector<16x32xf32> to vector<16x32xbf16>
    %cst_22 = arith.constant dense<0.000000e+00> : vector<8x32xf32>
    %31 = tpu.matmul %1, %30, %cst_22 {dimension_numbers = #tpu.dot_dimension_numbers<[1], [0], [0], [1], [0, 0, 1, 1], [], []>} : vector<8x16xbf16>, vector<16x32xbf16>, vector<8x32xf32> -> vector<8x32xf32>
    %c0_23 = arith.constant 0 : index
    %c0_24 = arith.constant 0 : index
    %32 = vector.load %arg8[%c0_23, %c0_24] : memref<96x32xbf16, #tpu.memory_space<vmem>>, vector<32x32xbf16>
    %33 = arith.truncf %31 : vector<8x32xf32> to vector<8x32xbf16>
    %cst_25 = arith.constant dense<0.000000e+00> : vector<8x32xf32>
    %34 = tpu.matmul %33, %32, %cst_25 {dimension_numbers = #tpu.dot_dimension_numbers<[1], [0], [0], [1], [0, 0, 1, 1], [], []>} : vector<8x32xbf16>, vector<32x32xbf16>, vector<8x32xf32> -> vector<8x32xf32>
    %35 = vector.broadcast %29 : vector<1x32xf32> to vector<8x32xf32>
    %36 = arith.addf %35, %34 : vector<8x32xf32>
    %37 = arith.truncf %19 : vector<16x32xf32> to vector<16x32xbf16>
    %cst_26 = arith.constant dense<0.000000e+00> : vector<8x32xf32>
    %38 = tpu.matmul %1, %37, %cst_26 {dimension_numbers = #tpu.dot_dimension_numbers<[1], [0], [0], [1], [0, 0, 1, 1], [], []>} : vector<8x16xbf16>, vector<16x32xbf16>, vector<8x32xf32> -> vector<8x32xf32>
    %c32 = arith.constant 32 : index
    %c0_27 = arith.constant 0 : index
    %39 = vector.load %arg8[%c32, %c0_27] : memref<96x32xbf16, #tpu.memory_space<vmem>>, vector<32x32xbf16>
    %40 = arith.truncf %38 : vector<8x32xf32> to vector<8x32xbf16>
    %cst_28 = arith.constant dense<0.000000e+00> : vector<8x32xf32>
    %41 = tpu.matmul %40, %39, %cst_28 {dimension_numbers = #tpu.dot_dimension_numbers<[1], [0], [0], [1], [0, 0, 1, 1], [], []>} : vector<8x32xbf16>, vector<32x32xbf16>, vector<8x32xf32> -> vector<8x32xf32>
    %42 = arith.addf %36, %41 : vector<8x32xf32>
    %43 = arith.truncf %28 : vector<16x32xf32> to vector<16x32xbf16>
    %cst_29 = arith.constant dense<0.000000e+00> : vector<8x32xf32>
    %44 = tpu.matmul %1, %43, %cst_29 {dimension_numbers = #tpu.dot_dimension_numbers<[1], [0], [0], [1], [0, 0, 1, 1], [], []>} : vector<8x16xbf16>, vector<16x32xbf16>, vector<8x32xf32> -> vector<8x32xf32>
    %c64 = arith.constant 64 : index
    %c0_30 = arith.constant 0 : index
    %45 = vector.load %arg8[%c64, %c0_30] : memref<96x32xbf16, #tpu.memory_space<vmem>>, vector<32x32xbf16>
    %46 = arith.truncf %44 : vector<8x32xf32> to vector<8x32xbf16>
    %cst_31 = arith.constant dense<0.000000e+00> : vector<8x32xf32>
    %47 = tpu.matmul %46, %45, %cst_31 {dimension_numbers = #tpu.dot_dimension_numbers<[1], [0], [0], [1], [0, 0, 1, 1], [], []>} : vector<8x32xbf16>, vector<32x32xbf16>, vector<8x32xf32> -> vector<8x32xf32>
    %48 = arith.addf %42, %47 : vector<8x32xf32>
    %cst_32 = arith.constant 0.000000e+00 : f32
    %49 = vector.broadcast %cst_32 : f32 to vector<8x32xf32>
    %50 = arith.maximumf %48, %49 : vector<8x32xf32>
    %51 = arith.truncf %50 : vector<8x32xf32> to vector<8x32xbf16>
    %c0_33 = arith.constant 0 : index
    %c0_34 = arith.constant 0 : index
    %52 = vector.load %arg10[%c0_33, %c0_34] : memref<32x128xbf16, #tpu.memory_space<vmem>>, vector<32x128xbf16>
    %cst_35 = arith.constant dense<0.000000e+00> : vector<8x128xf32>
    %53 = tpu.matmul %51, %52, %cst_35 {dimension_numbers = #tpu.dot_dimension_numbers<[1], [0], [0], [1], [0, 0, 1, 1], [], []>} : vector<8x32xbf16>, vector<32x128xbf16>, vector<8x128xf32> -> vector<8x128xf32>
    %c0_36 = arith.constant 0 : index
    %c0_37 = arith.constant 0 : index
    %54 = vector.load %arg11[%c0_36, %c0_37] : memref<1x128xf32, #tpu.memory_space<vmem>>, vector<1x128xf32>
    %55 = vector.broadcast %54 : vector<1x128xf32> to vector<8x128xf32>
    %56 = arith.addf %53, %55 : vector<8x128xf32>
    %cst_38 = arith.constant dense<0xFF800000> : vector<8xf32>
    %57 = vector.multi_reduction <maximumf>, %56, %cst_38 [1] : vector<8x128xf32> to vector<8xf32>
    %58 = vector.shape_cast %57 : vector<8xf32> to vector<8x1xf32>
    %59 = vector.broadcast %58 : vector<8x1xf32> to vector<8x128xf32>
    %60 = arith.subf %56, %59 : vector<8x128xf32>
    %61 = math.exp %60 : vector<8x128xf32>
    %cst_39 = arith.constant dense<0.000000e+00> : vector<8xf32>
    %62 = vector.multi_reduction <add>, %61, %cst_39 [1] : vector<8x128xf32> to vector<8xf32>
    %63 = vector.shape_cast %62 : vector<8xf32> to vector<8x1xf32>
    %64 = math.log %63 : vector<8x1xf32>
    %65 = arith.addf %58, %64 : vector<8x1xf32>
    %66 = vector.broadcast %65 : vector<8x1xf32> to vector<8x128xf32>
    %67 = arith.subf %56, %66 : vector<8x128xf32>
    %c0_40 = arith.constant 0 : index
    %c0_41 = arith.constant 0 : index
    %68 = vector.load %arg12[%c0_40, %c0_41] : memref<8x128xf32, #tpu.memory_space<vmem>>, vector<8x128xf32>
    tpu.vector_store %arg12[%c0_40, %c0_41], %67 {strides = array<i32>} : memref<8x128xf32, #tpu.memory_space<vmem>>, vector<8x128xf32>,
    return
  }
  func.func @transform_0(%arg0: i32) -> (i32, i32) {
    %c0_i32 = arith.constant 0 : i32
    %c0_i32_0 = arith.constant 0 : i32
    %c0_i32_1 = arith.constant 0 : i32
    return %c0_i32, %c0_i32_0 : i32, i32
  }
  func.func @transform_1(%arg0: i32) -> (i32, i32) {
    %c0_i32 = arith.constant 0 : i32
    %c0_i32_0 = arith.constant 0 : i32
    %c0_i32_1 = arith.constant 0 : i32
    return %c0_i32, %c0_i32_0 : i32, i32
  }
  func.func @transform_2(%arg0: i32) -> (i32, i32) {
    %c0_i32 = arith.constant 0 : i32
    %c0_i32_0 = arith.constant 0 : i32
    %c0_i32_1 = arith.constant 0 : i32
    return %c0_i32, %c0_i32_0 : i32, i32
  }
  func.func @transform_3(%arg0: i32) -> (i32, i32) {
    %c0_i32 = arith.constant 0 : i32
    %c0_i32_0 = arith.constant 0 : i32
    %c0_i32_1 = arith.constant 0 : i32
    return %c0_i32, %c0_i32_0 : i32, i32
  }
  func.func @transform_4(%arg0: i32) -> (i32, i32) {
    %c0_i32 = arith.constant 0 : i32
    %c0_i32_0 = arith.constant 0 : i32
    %c0_i32_1 = arith.constant 0 : i32
    return %c0_i32, %c0_i32_0 : i32, i32
  }
  func.func @transform_5(%arg0: i32) -> (i32, i32) {
    %c0_i32 = arith.constant 0 : i32
    %c0_i32_0 = arith.constant 0 : i32
    %c0_i32_1 = arith.constant 0 : i32
    return %c0_i32, %c0_i32_0 : i32, i32
  }
  func.func @transform_6(%arg0: i32) -> (i32, i32) {
    %c0_i32 = arith.constant 0 : i32
    %c0_i32_0 = arith.constant 0 : i32
    %c0_i32_1 = arith.constant 0 : i32
    return %c0_i32, %c0_i32_0 : i32, i32
  }
  func.func @transform_7(%arg0: i32) -> (i32, i32) {
    %c0_i32 = arith.constant 0 : i32
    %c0_i32_0 = arith.constant 0 : i32
    %c0_i32_1 = arith.constant 0 : i32
    return %c0_i32, %c0_i32_0 : i32, i32
  }
  func.func @transform_8(%arg0: i32) -> (i32, i32) {
    %c0_i32 = arith.constant 0 : i32
    %c0_i32_0 = arith.constant 0 : i32
    %c0_i32_1 = arith.constant 0 : i32
    return %c0_i32, %c0_i32_0 : i32, i32
  }
  func.func @transform_9(%arg0: i32) -> (i32, i32) {
    %c0_i32 = arith.constant 0 : i32
    %c0_i32_0 = arith.constant 0 : i32
    %c0_i32_1 = arith.constant 0 : i32
    return %c0_i32, %c0_i32_0 : i32, i32
  }
  func.func @transform_10(%arg0: i32) -> (i32, i32) {
    %c0_i32 = arith.constant 0 : i32
    %c0_i32_0 = arith.constant 0 : i32
    %c0_i32_1 = arith.constant 0 : i32
    return %c0_i32, %c0_i32_0 : i32, i32
  }
  func.func @transform_11(%arg0: i32) -> (i32, i32) {
    %c0_i32 = arith.constant 0 : i32
    %c0_i32_0 = arith.constant 0 : i32
    %c0_i32_1 = arith.constant 0 : i32
    return %c0_i32, %c0_i32_0 : i32, i32
  }
}

</mosaic_0001>

<llo_original>
// kernel: net_forward.1
$region0: #{net_forward.1}
  #allocation0 [shape = 'u32[]', space=smem, size = 0x4, offset = 0x4, fixed_abs, tag = 'smem constant byte address 0x4 - core index']
  #allocation1 [shape = 'u32[72,128]{1,0:T(1,128)}', space=vmem, size = 0x9000, scoped, tag = 'internal scratch']
  %s0 = inlined_call_operand.vmem [shape: bf16[16,16], index: 0, kind: input, shape index: {}]
  %s1 = inlined_call_operand.vmem [shape: bf16[16,16], index: 1, kind: input, shape index: {}]
  %s2 = inlined_call_operand.vmem [shape: bf16[16,32], index: 2, kind: input, shape index: {}]
  %s3 = inlined_call_operand.vmem [shape: bf16[32,32], index: 3, kind: input, shape index: {}]
  %s4 = inlined_call_operand.vmem [shape: bf16[32,32], index: 4, kind: input, shape index: {}]
  %s5 = inlined_call_operand.vmem [shape: f32[3,32], index: 5, kind: input, shape index: {}]
  %s6 = inlined_call_operand.vmem [shape: bf16[8,16], index: 6, kind: input, shape index: {}]
  %s7 = inlined_call_operand.vmem [shape: bf16[96,32], index: 7, kind: input, shape index: {}]
  %s8 = inlined_call_operand.vmem [shape: f32[1,32], index: 8, kind: input, shape index: {}]
  %s9 = inlined_call_operand.vmem [shape: bf16[32,128], index: 9, kind: input, shape index: {}]
  %s10 = inlined_call_operand.vmem [shape: f32[1,128], index: 10, kind: input, shape index: {}]
  %s11 = inlined_call_operand.vmem [shape: f32[8,128], index: 11, kind: output, shape index: {}]
  %s12 = sld [smem:[#allocation0]]
  $region54: #{net_forward.1} parent=0
    _
  %s14 = ssub.s32 1, %s12
  %s15 = scalar_select 0, %s14, %s12
  // Predicated region
  $region2: #{net_forward.1} parent=0 // pred_check
    _
  $region3: #{net_forward.1} parent=0 // pred_check_branch
    %17 = sbr.rel (0) target = $region5
  $region4: #{net_forward.1} parent=0 // pred_region
    _
  $region5: #{net_forward.1} parent=0 // pred_fallthru
    _
  // Predicated region
  $region6: #{net_forward.1} parent=0 // pred_check
    _
  $region7: #{net_forward.1} parent=0 // pred_check_branch
    %19 = sbr.rel (0) target = $region9
  $region8: #{net_forward.1} parent=0 // pred_region
    _
  $region9: #{net_forward.1} parent=0 // pred_fallthru
    _
  // Predicated region
  $region10: #{net_forward.1} parent=0 // pred_check
    _
  $region11: #{net_forward.1} parent=0 // pred_check_branch
    %21 = sbr.rel (0) target = $region13
  $region12: #{net_forward.1} parent=0 // pred_region
    _
  $region13: #{net_forward.1} parent=0 // pred_fallthru
    _
  // Predicated region
  $region14: #{net_forward.1} parent=0 // pred_check
    _
  $region15: #{net_forward.1} parent=0 // pred_check_branch
    %23 = sbr.rel (0) target = $region17
  $region16: #{net_forward.1} parent=0 // pred_region
    _
  $region17: #{net_forward.1} parent=0 // pred_fallthru
    _
  // Predicated region
  $region18: #{net_forward.1} parent=0 // pred_check
    _
  $region19: #{net_forward.1} parent=0 // pred_check_branch
    %25 = sbr.rel (0) target = $region21
  $region20: #{net_forward.1} parent=0 // pred_region
    _
  $region21: #{net_forward.1} parent=0 // pred_fallthru
    _
  // Predicated region
  $region22: #{net_forward.1} parent=0 // pred_check
    _
  $region23: #{net_forward.1} parent=0 // pred_check_branch
    %27 = sbr.rel (0) target = $region25
  $region24: #{net_forward.1} parent=0 // pred_region
    _
  $region25: #{net_forward.1} parent=0 // pred_fallthru
    _
  // Predicated region
  $region26: #{net_forward.1} parent=0 // pred_check
    _
  $region27: #{net_forward.1} parent=0 // pred_check_branch
    %29 = sbr.rel (0) target = $region29
  $region28: #{net_forward.1} parent=0 // pred_region
    _
  $region29: #{net_forward.1} parent=0 // pred_fallthru
    _
  // Predicated region
  $region30: #{net_forward.1} parent=0 // pred_check
    _
  $region31: #{net_forward.1} parent=0 // pred_check_branch
    %31 = sbr.rel (0) target = $region33
  $region32: #{net_forward.1} parent=0 // pred_region
    _
  $region33: #{net_forward.1} parent=0 // pred_fallthru
    _
  // Predicated region
  $region34: #{net_forward.1} parent=0 // pred_check
    _
  $region35: #{net_forward.1} parent=0 // pred_check_branch
    %33 = sbr.rel (0) target = $region37
  $region36: #{net_forward.1} parent=0 // pred_region
    _
  $region37: #{net_forward.1} parent=0 // pred_fallthru
    _
  // Predicated region
  $region38: #{net_forward.1} parent=0 // pred_check
    _
  $region39: #{net_forward.1} parent=0 // pred_check_branch
    %35 = sbr.rel (0) target = $region41
  $region40: #{net_forward.1} parent=0 // pred_region
    _
  $region41: #{net_forward.1} parent=0 // pred_fallthru
    _
  // Predicated region
  $region42: #{net_forward.1} parent=0 // pred_check
    _
  $region43: #{net_forward.1} parent=0 // pred_check_branch
    %37 = sbr.rel (0) target = $region45
  $region44: #{net_forward.1} parent=0 // pred_region
    _
  $region45: #{net_forward.1} parent=0 // pred_fallthru
    _
  %v39 = vld [vmem:[%s0] sm:$0xf]
  %v40 = vld [vmem:[%s0 + $0x4] sm:$0xf]
  %v41 = vld [vmem:[%s6] sm:$0xf]
  %v42 = vld [vmem:[%s1] sm:$0xf]
  %v43 = vld [vmem:[%s1 + $0x4] sm:$0xf]
  %v44 = vld [vmem:[%s5] sm:$0x1]
  %v45 = vld [vmem:[%s2] sm:$0xf]
  %v46 = vld [vmem:[%s2 + $0x4] sm:$0xf]
  %v49 = vunpack.c.l.b16 %v42
  %v50 = vunpack.c.l.b16 %v43
  %v51 = vpack.c.b16 %v50, %v49
  %v54 = vunpack.c.l.b16 %v45
  %v55 = vunpack.c.l.b16 %v46
  %v56 = vpack.c.b16 %v55, %v54
  %vm58 = vcmask 130048
  %v60 = vsel %vm58, %v51, 0
  %62 = vmatpush.bf16.msra.mxu0 0
  %63 = vmatpush.bf16.msra.mxu0 0
  %64 = vmatpush.bf16.msra.mxu0 0
  %65 = vmatpush.bf16.msra.mxu0 0
  %66 = vmatpush.bf16.msra.mxu0 0
  %67 = vmatpush.bf16.msra.mxu0 0
  %68 = vmatpush.bf16.msra.mxu0 0
  %69 = vmatpush.bf16.msra.mxu0 %v56
  %70 = vmatmul.bf16.gmra.mxu0 %v60
  %v71 = vpop.f32.mrf.mxu0
  %v72 = vadd.f32 0.0, %v71
  %v73 = vpop.f32.mrf.mxu0
  %v74 = vadd.f32 0.0, %v73
  %75 = vdwg.mxu0
  %v76 = vpack.c.bf16 %v74, %v72
  %v77 = vperm.slane %v44, 0
  %v80 = vunpack.c.l.b16 %v39
  %v81 = vunpack.c.l.b16 %v40
  %v82 = vpack.c.b16 %v81, %v80
  %v84 = vsel %vm58, %v82, 0
  %86 = vmatpush.bf16.msra.mxu0 0
  %87 = vmatpush.bf16.msra.mxu0 0
  %88 = vmatpush.bf16.msra.mxu0 0
  %89 = vmatpush.bf16.msra.mxu0 0
  %90 = vmatpush.bf16.msra.mxu0 0
  %91 = vmatpush.bf16.msra.mxu0 0
  %92 = vmatpush.bf16.msra.mxu0 0
  %93 = vmatpush.bf16.msra.mxu0 %v76
  %94 = vmatmul.bf16.gmra.mxu0 %v84
  %v95 = vpop.f32.mrf.mxu0
  %v96 = vadd.f32 %v77, %v95
  %v97 = vpop.f32.mrf.mxu0
  %v98 = vadd.f32 %v77, %v97
  %99 = vdwg.mxu0
  %v100 = vtanh.pop %v96
  %v101 = vtanh.pop %v98
  %v102 = vpack.c.bf16 %v101, %v100
  %v103 = vld [vmem:[%s5 + $0x1] sm:$0x1]
  %v104 = vld [vmem:[%s3] sm:$0xf]
  %v105 = vld [vmem:[%s3 + $0x4] sm:$0xf]
  %v106 = vld [vmem:[%s3 + $0x8] sm:$0xf]
  %v107 = vld [vmem:[%s3 + $0xc] sm:$0xf]
  %v112 = vunpack.c.l.b16 %v104
  %v113 = vunpack.c.l.b16 %v105
  %v114 = vunpack.c.l.b16 %v106
  %v115 = vunpack.c.l.b16 %v107
  %v116 = vpack.c.b16 %v113, %v112
  %v117 = vpack.c.b16 %v115, %v114
  %vm120 = vcmask 261120
  %v122 = vsel %vm120, %v102, 0
  %124 = vmatpush.bf16.msra.mxu0 0
  %125 = vmatpush.bf16.msra.mxu0 0
  %126 = vmatpush.bf16.msra.mxu0 0
  %127 = vmatpush.bf16.msra.mxu0 0
  %128 = vmatpush.bf16.msra.mxu0 0
  %129 = vmatpush.bf16.msra.mxu0 0
  %130 = vmatpush.bf16.msra.mxu0 %v117
  %131 = vmatpush.bf16.msra.mxu0 %v116
  %132 = vmatmul.bf16.gmra.mxu0 %v122
  %v133 = vpop.f32.mrf.mxu0
  %v134 = vadd.f32 0.0, %v133
  %v135 = vpop.f32.mrf.mxu0
  %v136 = vadd.f32 0.0, %v135
  %137 = vdwg.mxu0
  %v138 = vpack.c.bf16 %v136, %v134
  %v139 = vperm.slane %v103, 0
  %140 = vmatpush.bf16.msra.mxu0 0
  %141 = vmatpush.bf16.msra.mxu0 0
  %142 = vmatpush.bf16.msra.mxu0 0
  %143 = vmatpush.bf16.msra.mxu0 0
  %144 = vmatpush.bf16.msra.mxu0 0
  %145 = vmatpush.bf16.msra.mxu0 0
  %146 = vmatpush.bf16.msra.mxu0 0
  %147 = vmatpush.bf16.msra.mxu0 %v138
  %148 = vmatmul.bf16.gmra.mxu0 %v84
  %v149 = vpop.f32.mrf.mxu0
  %v150 = vadd.f32 %v139, %v149
  %v151 = vpop.f32.mrf.mxu0
  %v152 = vadd.f32 %v139, %v151
  %153 = vdwg.mxu0
  %v154 = vtanh.pop %v150
  %v155 = vtanh.pop %v152
  %v156 = vpack.c.bf16 %v155, %v154
  %v157 = vld [vmem:[%s5 + $0x2] sm:$0x1]
  %v158 = vld [vmem:[%s4] sm:$0xf]
  %v159 = vld [vmem:[%s4 + $0x4] sm:$0xf]
  %v160 = vld [vmem:[%s4 + $0x8] sm:$0xf]
  %v161 = vld [vmem:[%s4 + $0xc] sm:$0xf]
  %v166 = vunpack.c.l.b16 %v158
  %v167 = vunpack.c.l.b16 %v159
  %v168 = vunpack.c.l.b16 %v160
  %v169 = vunpack.c.l.b16 %v161
  %v170 = vpack.c.b16 %v167, %v166
  %v171 = vpack.c.b16 %v169, %v168
  %v175 = vsel %vm120, %v156, 0
  %177 = vmatpush.bf16.msra.mxu0 0
  %178 = vmatpush.bf16.msra.mxu0 0
  %179 = vmatpush.bf16.msra.mxu0 0
  %180 = vmatpush.bf16.msra.mxu0 0
  %181 = vmatpush.bf16.msra.mxu0 0
  %182 = vmatpush.bf16.msra.mxu0 0
  %183 = vmatpush.bf16.msra.mxu0 %v171
  %184 = vmatpush.bf16.msra.mxu0 %v170
  %185 = vmatmul.bf16.gmra.mxu0 %v175
  %v186 = vpop.f32.mrf.mxu0
  %v187 = vadd.f32 0.0, %v186
  %v188 = vpop.f32.mrf.mxu0
  %v189 = vadd.f32 0.0, %v188
  %190 = vdwg.mxu0
  %v191 = vpack.c.bf16 %v189, %v187
  %v192 = vperm.slane %v157, 0
  %193 = vmatpush.bf16.msra.mxu0 0
  %194 = vmatpush.bf16.msra.mxu0 0
  %195 = vmatpush.bf16.msra.mxu0 0
  %196 = vmatpush.bf16.msra.mxu0 0
  %197 = vmatpush.bf16.msra.mxu0 0
  %198 = vmatpush.bf16.msra.mxu0 0
  %199 = vmatpush.bf16.msra.mxu0 0
  %200 = vmatpush.bf16.msra.mxu0 %v191
  %201 = vmatmul.bf16.gmra.mxu0 %v84
  %v202 = vpop.f32.mrf.mxu0
  %v203 = vadd.f32 %v192, %v202
  %v204 = vpop.f32.mrf.mxu0
  %v205 = vadd.f32 %v192, %v204
  %206 = vdwg.mxu0
  %v207 = vtanh.pop %v203
  %v208 = vtanh.pop %v205
  %v209 = vld [vmem:[%s8] sm:$0x1]
  %v211 = vsel %vm58, %v41, 0
  %213 = vmatpush.bf16.msra.mxu0 0
  %214 = vmatpush.bf16.msra.mxu0 0
  %215 = vmatpush.bf16.msra.mxu0 0
  %216 = vmatpush.bf16.msra.mxu0 0
  %217 = vmatpush.bf16.msra.mxu0 0
  %218 = vmatpush.bf16.msra.mxu0 0
  %219 = vmatpush.bf16.msra.mxu0 0
  %220 = vmatpush.bf16.msra.mxu0 %v102
  %221 = vmatmul.bf16.gmra.mxu0 %v211
  %v222 = vpop.f32.mrf.mxu0
  %v223 = vadd.f32 0.0, %v222
  %v224 = vpop.f32.mrf.mxu0
  %225 = vdwg.mxu0
  %v226 = vld [vmem:[%s7] sm:$0xf]
  %v227 = vld [vmem:[%s7 + $0x4] sm:$0xf]
  %v228 = vld [vmem:[%s7 + $0x8] sm:$0xf]
  %v229 = vld [vmem:[%s7 + $0xc] sm:$0xf]
  %v230 = vpack.c.bf16 %v223, %v223
  %v235 = vunpack.c.l.b16 %v226
  %v236 = vunpack.c.l.b16 %v227
  %v237 = vunpack.c.l.b16 %v228
  %v238 = vunpack.c.l.b16 %v229
  %v239 = vpack.c.b16 %v236, %v235
  %v240 = vpack.c.b16 %v238, %v237
  %v244 = vsel %vm120, %v230, 0
  %246 = vmatpush.bf16.msra.mxu0 0
  %247 = vmatpush.bf16.msra.mxu0 0
  %248 = vmatpush.bf16.msra.mxu0 0
  %249 = vmatpush.bf16.msra.mxu0 0
  %250 = vmatpush.bf16.msra.mxu0 0
  %251 = vmatpush.bf16.msra.mxu0 0
  %252 = vmatpush.bf16.msra.mxu0 %v240
  %253 = vmatpush.bf16.msra.mxu0 %v239
  %254 = vmatmul.bf16.gmra.mxu0 %v244
  %v255 = vpop.f32.mrf.mxu0
  %v256 = vadd.f32 0.0, %v255
  %v257 = vpop.f32.mrf.mxu0
  %258 = vdwg.mxu0
  %v260 = vperm.slane %v209, 0
  %v262 = vadd.f32 %v260, %v256
  %263 = vmatpush.bf16.msra.mxu0 0
  %264 = vmatpush.bf16.msra.mxu0 0
  %265 = vmatpush.bf16.msra.mxu0 0
  %266 = vmatpush.bf16.msra.mxu0 0
  %267 = vmatpush.bf16.msra.mxu0 0
  %268 = vmatpush.bf16.msra.mxu0 0
  %269 = vmatpush.bf16.msra.mxu0 0
  %270 = vmatpush.bf16.msra.mxu0 %v156
  %271 = vmatmul.bf16.gmra.mxu0 %v211
  %v272 = vpop.f32.mrf.mxu0
  %v273 = vadd.f32 0.0, %v272
  %v274 = vpop.f32.mrf.mxu0
  %275 = vdwg.mxu0
  %v276 = vld [vmem:[%s7 + $0x10] sm:$0xf]
  %v277 = vld [vmem:[%s7 + $0x14] sm:$0xf]
  %v278 = vld [vmem:[%s7 + $0x18] sm:$0xf]
  %v279 = vld [vmem:[%s7 + $0x1c] sm:$0xf]
  %v280 = vpack.c.bf16 %v273, %v273
  %v285 = vunpack.c.l.b16 %v276
  %v286 = vunpack.c.l.b16 %v277
  %v287 = vunpack.c.l.b16 %v278
  %v288 = vunpack.c.l.b16 %v279
  %v289 = vpack.c.b16 %v286, %v285
  %v290 = vpack.c.b16 %v288, %v287
  %v294 = vsel %vm120, %v280, 0
  %296 = vmatpush.bf16.msra.mxu0 0
  %297 = vmatpush.bf16.msra.mxu0 0
  %298 = vmatpush.bf16.msra.mxu0 0
  %299 = vmatpush.bf16.msra.mxu0 0
  %300 = vmatpush.bf16.msra.mxu0 0
  %301 = vmatpush.bf16.msra.mxu0 0
  %302 = vmatpush.bf16.msra.mxu0 %v290
  %303 = vmatpush.bf16.msra.mxu0 %v289
  %304 = vmatmul.bf16.gmra.mxu0 %v294
  %v305 = vpop.f32.mrf.mxu0
  %v306 = vadd.f32 0.0, %v305
  %v307 = vpop.f32.mrf.mxu0
  %308 = vdwg.mxu0
  %v309 = vadd.f32 %v262, %v306
  %v310 = vpack.c.bf16 %v208, %v207
  %311 = vmatpush.bf16.msra.mxu0 0
  %312 = vmatpush.bf16.msra.mxu0 0
  %313 = vmatpush.bf16.msra.mxu0 0
  %314 = vmatpush.bf16.msra.mxu0 0
  %315 = vmatpush.bf16.msra.mxu0 0
  %316 = vmatpush.bf16.msra.mxu0 0
  %317 = vmatpush.bf16.msra.mxu0 0
  %318 = vmatpush.bf16.msra.mxu0 %v310
  %319 = vmatmul.bf16.gmra.mxu0 %v211
  %v320 = vpop.f32.mrf.mxu0
  %v321 = vadd.f32 0.0, %v320
  %v322 = vpop.f32.mrf.mxu0
  %323 = vdwg.mxu0
  %v324 = vld [vmem:[%s7 + $0x20] sm:$0xf]
  %v325 = vld [vmem:[%s7 + $0x24] sm:$0xf]
  %v326 = vld [vmem:[%s7 + $0x28] sm:$0xf]
  %v327 = vld [vmem:[%s7 + $0x2c] sm:$0xf]
  %v328 = vpack.c.bf16 %v321, %v321
  %v333 = vunpack.c.l.b16 %v324
  %v334 = vunpack.c.l.b16 %v325
  %v335 = vunpack.c.l.b16 %v326
  %v336 = vunpack.c.l.b16 %v327
  %v337 = vpack.c.b16 %v334, %v333
  %v338 = vpack.c.b16 %v336, %v335
  %v342 = vsel %vm120, %v328, 0
  %344 = vmatpush.bf16.msra.mxu0 0
  %345 = vmatpush.bf16.msra.mxu0 0
  %346 = vmatpush.bf16.msra.mxu0 0
  %347 = vmatpush.bf16.msra.mxu0 0
  %348 = vmatpush.bf16.msra.mxu0 0
  %349 = vmatpush.bf16.msra.mxu0 0
  %350 = vmatpush.bf16.msra.mxu0 %v338
  %351 = vmatpush.bf16.msra.mxu0 %v337
  %352 = vmatmul.bf16.gmra.mxu0 %v342
  %v353 = vpop.f32.mrf.mxu0
  %v354 = vadd.f32 0.0, %v353
  %v355 = vpop.f32.mrf.mxu0
  %356 = vdwg.mxu0
  %v357 = vadd.f32 %v309, %v354
  %v358 = vmax.f32 %v357, 0.0
  %v359 = vpack.c.bf16 %v358, %v358
  %v360 = vld [vmem:[%s9] sm:$0xf]
  %v361 = vld [vmem:[%s9 + $0x4] sm:$0xf]
  %v362 = vld [vmem:[%s9 + $0x8] sm:$0xf]
  %v363 = vld [vmem:[%s9 + $0xc] sm:$0xf]
  %v364 = vld [vmem:[%s10] sm:$0x1]
  %v366 = vperm.slane %v364, 0
  %v372 = vunpack.c.l.b16 %v360
  %v373 = vunpack.c.l.b16 %v361
  %v374 = vunpack.c.l.b16 %v362
  %v375 = vunpack.c.l.b16 %v363
  %v376 = vpack.c.b16 %v373, %v372
  %v377 = vpack.c.b16 %v375, %v374
  %v381 = vsel %vm120, %v359, 0
  %383 = vmatpush.bf16.msra.mxu0 0
  %384 = vmatpush.bf16.msra.mxu0 0
  %385 = vmatpush.bf16.msra.mxu0 0
  %386 = vmatpush.bf16.msra.mxu0 0
  %387 = vmatpush.bf16.msra.mxu0 0
  %388 = vmatpush.bf16.msra.mxu0 0
  %389 = vmatpush.bf16.msra.mxu0 %v377
  %390 = vmatpush.bf16.msra.mxu0 %v376
  %391 = vmatmul.bf16.gmra.mxu0 %v381
  %v392 = vpop.f32.mrf.mxu0
  %v393 = vadd.f32 %v366, %v392
  %v394 = vpop.f32.mrf.mxu0
  %395 = vdwg.mxu0
  %396 = vmax.xlane.f32.xlu0 %v393
  %v397 = vpop.xlane.xlu0 %396
  %v398 = vsub.f32 %v393, %v397
  %v399 = vmul.f32 %v398, 1.442695
  %v400 = vpow.pop %v399
  %401 = vadd.xlane.f32.xlu0 %v400
  %v402 = vpop.xlane.xlu0 %401
  %v403 = vlog2.pop %v402
  %v404 = vmul.f32 %v403, 0.6931472
  %v405 = vadd.f32 %v397, %v404
  %v406 = vsub.f32 %v393, %v405
  %407 = vst [vmem:[%s11] sm:$0xff] %v406
  // Predicated region
  $region46: #{net_forward.1} parent=0 // pred_check
    _
  $region47: #{net_forward.1} parent=0 // pred_check_branch
    %409 = sbr.rel (0) target = $region49
  $region48: #{net_forward.1} parent=0 // pred_region
    _
  $region49: #{net_forward.1} parent=0 // pred_fallthru
    _
  // Predicated region
  $region50: #{net_forward.1} parent=0 // pred_check
    _
  $region51: #{net_forward.1} parent=0 // pred_check_branch
    %411 = sbr.rel (0) target = $region53
  $region52: #{net_forward.1} parent=0 // pred_region
    _
  $region53: #{net_forward.1} parent=0 // pred_fallthru
    _

</llo_original>
